<compile_context>
chip_gen: v6e
topology: v6e:2x2x1
jax: 0.10.0
libtpu: 0.0.40
codegen_flags: <defaults>
</compile_context>

<pallas_src>
import functools

import jax
import jax.numpy as jnp
from jax.experimental import pallas as pl
from jax.experimental.pallas import tpu as pltpu


def _round_up(n, m=128):
    return ((n + m - 1) // m) * m


def _mlp_kernel(x_ref,
                w1_ref, b1_ref,
                w2_ref, b2_ref,
                w3_ref, b3_ref,
                w4_ref, b4_ref,
                o_ref):
    # Layer 1: (TB, D_in) @ (D_in, P1); bias + ReLU in f32, spill as bf16.
    h = jnp.dot(x_ref[...].astype(jnp.bfloat16), w1_ref[...],
                preferred_element_type=jnp.float32)
    h = jnp.maximum(h + b1_ref[...], 0.0).astype(jnp.bfloat16)

    # Layer 2: (TB, P1) @ (P1, P2)
    h = jnp.dot(h, w2_ref[...], preferred_element_type=jnp.float32)
    h = jnp.maximum(h + b2_ref[...], 0.0).astype(jnp.bfloat16)

    # Layer 3: (TB, P2) @ (P2, P3)
    h = jnp.dot(h, w3_ref[...], preferred_element_type=jnp.float32)
    h = jnp.maximum(h + b3_ref[...], 0.0).astype(jnp.bfloat16)

    # Layer 4: (TB, P3) @ (P3, P4) — the module applies ReLU here too.
    h = jnp.dot(h, w4_ref[...], preferred_element_type=jnp.float32)
    h = jnp.maximum(h + b4_ref[...], 0.0)

    # Store only the true output columns (padded lanes never leave VMEM).
    o_ref[...] = h[:, : o_ref.shape[1]].astype(o_ref.dtype)


def prepare_params(params):
    """One-time weight prep (call at parameter-load time, NOT per forward):
       - transpose nn.Linear weights (out, in) -> (in, out)
       - zero-pad each layer's output width (and next layer's input rows) to a
         multiple of 128 lanes
       - cast weights to bf16; biases stay f32 as (1, padded_out) rows.
       Returns a dict of arrays plus 'out_dim' (a plain Python int)."""
    w = [params[f"w{i}"] for i in range(1, 5)]
    b = [params[f"b{i}"] for i in range(1, 5)]
    in_dims = [wi.shape[1] for wi in w]      # PyTorch convention: (out, in)
    out_dims = [wi.shape[0] for wi in w]
    pad_out = [_round_up(d) for d in out_dims]
    pad_in = [in_dims[0]] + pad_out[:-1]     # layer-1 K left unpadded

    prepared = {"out_dim": int(out_dims[-1])}
    for i in range(4):
        wp = jnp.zeros((pad_in[i], pad_out[i]), jnp.bfloat16)
        wp = wp.at[:in_dims[i], :out_dims[i]].set(w[i].T.astype(jnp.bfloat16))
        bp = jnp.zeros((1, pad_out[i]), jnp.float32)
        bp = bp.at[:, :out_dims[i]].set(b[i].astype(jnp.float32))
        prepared[f"w{i + 1}"] = wp
        prepared[f"b{i + 1}"] = bp
    return prepared


@functools.partial(jax.jit, static_argnames=("out_dim", "tile_b"))
def _forward_impl(x, w1, b1, w2, b2, w3, b3, w4, b4, *, out_dim, tile_b):
    B, din = x.shape

    # Batch tile: a multiple of 8 (sublane-aligned), capped at tile_b, and
    # kept near ceil(B/4) so large batches give v7x's two TensorCores >= 2
    # (ideally >= 4) grid steps under dimension_semantics=("parallel",).
    tb = min(tile_b, max(8, _round_up(-(-B // 4), 8)))
    tb = _round_up(tb, 8)
    n_tiles = pl.cdiv(B, tb)   # ragged boundary block is masked by Pallas

    def resident(a):  # full array, VMEM-resident across all grid steps
        return pl.BlockSpec(a.shape, lambda i: (0, 0))

    return pl.pallas_call(
        _mlp_kernel,
        out_shape=jax.ShapeDtypeStruct((B, out_dim), x.dtype),
        grid=(n_tiles,),
        in_specs=[pl.BlockSpec((tb, din), lambda i: (i, 0)),
                  resident(w1), resident(b1),
                  resident(w2), resident(b2),
                  resident(w3), resident(b3),
                  resident(w4), resident(b4)],
        # Block last dim == full array last dim (legal), contiguous output DMA.
        out_specs=pl.BlockSpec((tb, out_dim), lambda i: (i, 0)),
        compiler_params=pltpu.CompilerParams(
            dimension_semantics=("parallel",),
            vmem_limit_bytes=48 << 20),
    )(x, w1, b1, w2, b2, w3, b3, w4, b4)


def single_mlp_forward(x, prepared, *, tile_b=1024):
    """x: (B, input_dim) float32.  prepared: output of prepare_params()."""
    out_dim = prepared["out_dim"]          # Python int -> static under jit
    return _forward_impl(x,
                         prepared["w1"], prepared["b1"],
                         prepared["w2"], prepared["b2"],
                         prepared["w3"], prepared["b3"],
                         prepared["w4"], prepared["b4"],
                         out_dim=out_dim, tile_b=tile_b)


def init_params(key, input_dim, hidden_dim, output_dim):
    """Deterministic init mimicking nn.Linear shapes (weight: (out, in))."""
    dims = [(hidden_dim * 8, input_dim),
            (hidden_dim * 2, hidden_dim * 8),
            (hidden_dim // 2, hidden_dim * 2),
            (output_dim, hidden_dim // 2)]
    params = {}
    for i, (dout, din) in enumerate(dims, start=1):
        key, kw, kb = jax.random.split(key, 3)
        bound = 1.0 / jnp.sqrt(din)
        params[f"w{i}"] = jax.random.uniform(
            kw, (dout, din), jnp.float32, -bound, bound)
        params[f"b{i}"] = jax.random.uniform(
            kb, (dout,), jnp.float32, -bound, bound)
    return params


def reference_forward_f32(x, params):
    """Pure f32 reference of the PyTorch module in eval mode."""
    h = x
    for i in range(1, 5):
        h = jnp.maximum(h @ params[f"w{i}"].T + params[f"b{i}"], 0.0)
    return h


def reference_forward_bf16(x, prepared):
    """Reference mimicking the kernel numerics (bf16 operands, f32 acc,
       bf16 inter-layer spill)."""
    h = x.astype(jnp.bfloat16)
    for i in range(1, 5):
        h = jnp.dot(h, prepared[f"w{i}"], preferred_element_type=jnp.float32)
        h = jnp.maximum(h + prepared[f"b{i}"], 0.0)
        if i < 4:
            h = h.astype(jnp.bfloat16)
    return h[:, :prepared["out_dim"]]


if __name__ == "__main__":
    key = jax.random.PRNGKey(0)
    input_dim, hidden_dim, output_dim = 48, 32, 10
    batch = 8

    kx, kp, kx2 = jax.random.split(key, 3)
    x = jax.random.normal(kx, (batch, input_dim), jnp.float32)
    params = init_params(kp, input_dim, hidden_dim, output_dim)
    prepared = prepare_params(params)

    # Single-tile case (small B).
    out = jax.block_until_ready(single_mlp_forward(x, prepared))
    assert out.shape == (batch, output_dim)
    assert jnp.allclose(out, reference_forward_bf16(x, prepared),
                        atol=1e-2, rtol=1e-2), "mismatch vs bf16 reference"
    assert jnp.allclose(out, reference_forward_f32(x, params),
                        atol=5e-2, rtol=5e-2), "mismatch vs f32 reference"

    # Multi-tile ragged batch (exercises grid + boundary-block masking,
    # no wrapper-side padding).
    x2 = jax.random.normal(kx2, (40, input_dim), jnp.float32)
    out2 = jax.block_until_ready(single_mlp_forward(x2, prepared, tile_b=16))
    assert out2.shape == (40, output_dim)
    assert jnp.allclose(out2, reference_forward_bf16(x2, prepared),
                        atol=1e-2, rtol=1e-2), "mismatch vs bf16 reference (tiled)"
    assert jnp.allclose(out2, reference_forward_f32(x2, params),
                        atol=5e-2, rtol=5e-2), "mismatch vs f32 reference (tiled)"

    print("KERNEL_OK")
</pallas_src>

<mosaic_0001>
module attributes {stable_mosaic.version = 11 : i64} {
  func.func @_mlp_kernel(%arg0: i32, %arg1: memref<8x48xf32, #tpu.memory_space<vmem>>, %arg2: memref<48x256xbf16, #tpu.memory_space<vmem>>, %arg3: memref<1x256xf32, #tpu.memory_space<vmem>>, %arg4: memref<256x128xbf16, #tpu.memory_space<vmem>>, %arg5: memref<1x128xf32, #tpu.memory_space<vmem>>, %arg6: memref<128x128xbf16, #tpu.memory_space<vmem>>, %arg7: memref<1x128xf32, #tpu.memory_space<vmem>>, %arg8: memref<128x128xbf16, #tpu.memory_space<vmem>>, %arg9: memref<1x128xf32, #tpu.memory_space<vmem>>, %arg10: memref<8x10xf32, #tpu.memory_space<vmem>>) attributes {dimension_semantics = [#tpu.dimension_semantics<parallel>], iteration_bounds = array<i64: 1>, scalar_prefetch = 0 : i64, scratch_operands = 0 : i64, tpu.core_type = #tpu.core_type<tc>, window_params = [{transform_indices = @transform_0, window_bounds = array<i64: 8, 48>}, {pipeline_mode = #tpu.pipeline_mode<synchronous>, transform_indices = @transform_1, window_bounds = array<i64: 48, 256>}, {pipeline_mode = #tpu.pipeline_mode<synchronous>, transform_indices = @transform_2, window_bounds = array<i64: 1, 256>}, {pipeline_mode = #tpu.pipeline_mode<synchronous>, transform_indices = @transform_3, window_bounds = array<i64: 256, 128>}, {pipeline_mode = #tpu.pipeline_mode<synchronous>, transform_indices = @transform_4, window_bounds = array<i64: 1, 128>}, {pipeline_mode = #tpu.pipeline_mode<synchronous>, transform_indices = @transform_5, window_bounds = array<i64: 128, 128>}, {pipeline_mode = #tpu.pipeline_mode<synchronous>, transform_indices = @transform_6, window_bounds = array<i64: 1, 128>}, {pipeline_mode = #tpu.pipeline_mode<synchronous>, transform_indices = @transform_7, window_bounds = array<i64: 128, 128>}, {pipeline_mode = #tpu.pipeline_mode<synchronous>, transform_indices = @transform_8, window_bounds = array<i64: 1, 128>}, {transform_indices = @transform_9, window_bounds = array<i64: 8, 10>}]} {
    %c0 = arith.constant 0 : index
    %c0_0 = arith.constant 0 : index
    %0 = vector.load %arg1[%c0, %c0_0] : memref<8x48xf32, #tpu.memory_space<vmem>>, vector<8x48xf32>
    %1 = arith.truncf %0 : vector<8x48xf32> to vector<8x48xbf16>
    %c0_1 = arith.constant 0 : index
    %c0_2 = arith.constant 0 : index
    %2 = vector.load %arg2[%c0_1, %c0_2] : memref<48x256xbf16, #tpu.memory_space<vmem>>, vector<48x256xbf16>
    %cst = arith.constant dense<0.000000e+00> : vector<8x256xf32>
    %3 = tpu.matmul %1, %2, %cst {dimension_numbers = #tpu.dot_dimension_numbers<[1], [0], [0], [1], [0, 0, 1, 1], [], []>} : vector<8x48xbf16>, vector<48x256xbf16>, vector<8x256xf32> -> vector<8x256xf32>
    %c0_3 = arith.constant 0 : index
    %c0_4 = arith.constant 0 : index
    %4 = vector.load %arg3[%c0_3, %c0_4] : memref<1x256xf32, #tpu.memory_space<vmem>>, vector<1x256xf32>
    %5 = vector.broadcast %4 : vector<1x256xf32> to vector<8x256xf32>
    %6 = arith.addf %3, %5 : vector<8x256xf32>
    %cst_5 = arith.constant 0.000000e+00 : f32
    %7 = vector.broadcast %cst_5 : f32 to vector<8x256xf32>
    %8 = arith.maximumf %6, %7 : vector<8x256xf32>
    %9 = arith.truncf %8 : vector<8x256xf32> to vector<8x256xbf16>
    %c0_6 = arith.constant 0 : index
    %c0_7 = arith.constant 0 : index
    %10 = vector.load %arg4[%c0_6, %c0_7] : memref<256x128xbf16, #tpu.memory_space<vmem>>, vector<256x128xbf16>
    %cst_8 = arith.constant dense<0.000000e+00> : vector<8x128xf32>
    %11 = tpu.matmul %9, %10, %cst_8 {dimension_numbers = #tpu.dot_dimension_numbers<[1], [0], [0], [1], [0, 0, 1, 1], [], []>} : vector<8x256xbf16>, vector<256x128xbf16>, vector<8x128xf32> -> vector<8x128xf32>
    %c0_9 = arith.constant 0 : index
    %c0_10 = arith.constant 0 : index
    %12 = vector.load %arg5[%c0_9, %c0_10] : memref<1x128xf32, #tpu.memory_space<vmem>>, vector<1x128xf32>
    %13 = vector.broadcast %12 : vector<1x128xf32> to vector<8x128xf32>
    %14 = arith.addf %11, %13 : vector<8x128xf32>
    %cst_11 = arith.constant 0.000000e+00 : f32
    %15 = vector.broadcast %cst_11 : f32 to vector<8x128xf32>
    %16 = arith.maximumf %14, %15 : vector<8x128xf32>
    %17 = arith.truncf %16 : vector<8x128xf32> to vector<8x128xbf16>
    %c0_12 = arith.constant 0 : index
    %c0_13 = arith.constant 0 : index
    %18 = vector.load %arg6[%c0_12, %c0_13] : memref<128x128xbf16, #tpu.memory_space<vmem>>, vector<128x128xbf16>
    %cst_14 = arith.constant dense<0.000000e+00> : vector<8x128xf32>
    %19 = tpu.matmul %17, %18, %cst_14 {dimension_numbers = #tpu.dot_dimension_numbers<[1], [0], [0], [1], [0, 0, 1, 1], [], []>} : vector<8x128xbf16>, vector<128x128xbf16>, vector<8x128xf32> -> vector<8x128xf32>
    %c0_15 = arith.constant 0 : index
    %c0_16 = arith.constant 0 : index
    %20 = vector.load %arg7[%c0_15, %c0_16] : memref<1x128xf32, #tpu.memory_space<vmem>>, vector<1x128xf32>
    %21 = vector.broadcast %20 : vector<1x128xf32> to vector<8x128xf32>
    %22 = arith.addf %19, %21 : vector<8x128xf32>
    %cst_17 = arith.constant 0.000000e+00 : f32
    %23 = vector.broadcast %cst_17 : f32 to vector<8x128xf32>
    %24 = arith.maximumf %22, %23 : vector<8x128xf32>
    %25 = arith.truncf %24 : vector<8x128xf32> to vector<8x128xbf16>
    %c0_18 = arith.constant 0 : index
    %c0_19 = arith.constant 0 : index
    %26 = vector.load %arg8[%c0_18, %c0_19] : memref<128x128xbf16, #tpu.memory_space<vmem>>, vector<128x128xbf16>
    %cst_20 = arith.constant dense<0.000000e+00> : vector<8x128xf32>
    %27 = tpu.matmul %25, %26, %cst_20 {dimension_numbers = #tpu.dot_dimension_numbers<[1], [0], [0], [1], [0, 0, 1, 1], [], []>} : vector<8x128xbf16>, vector<128x128xbf16>, vector<8x128xf32> -> vector<8x128xf32>
    %c0_21 = arith.constant 0 : index
    %c0_22 = arith.constant 0 : index
    %28 = vector.load %arg9[%c0_21, %c0_22] : memref<1x128xf32, #tpu.memory_space<vmem>>, vector<1x128xf32>
    %29 = vector.broadcast %28 : vector<1x128xf32> to vector<8x128xf32>
    %30 = arith.addf %27, %29 : vector<8x128xf32>
    %cst_23 = arith.constant 0.000000e+00 : f32
    %31 = vector.broadcast %cst_23 : f32 to vector<8x128xf32>
    %32 = arith.maximumf %30, %31 : vector<8x128xf32>
    %33 = vector.extract_strided_slice %32 {offsets = [0, 0], sizes = [8, 10], strides = [1, 1]} : vector<8x128xf32> to vector<8x10xf32>
    %c0_24 = arith.constant 0 : index
    %c0_25 = arith.constant 0 : index
    %34 = vector.load %arg10[%c0_24, %c0_25] : memref<8x10xf32, #tpu.memory_space<vmem>>, vector<8x10xf32>
    tpu.vector_store %arg10[%c0_24, %c0_25], %33 {strides = array<i32>} : memref<8x10xf32, #tpu.memory_space<vmem>>, vector<8x10xf32>,
    return
  }
  func.func @transform_0(%arg0: i32) -> (i32, i32) {
    %c0_i32 = arith.constant 0 : i32
    %c0_i32_0 = arith.constant 0 : i32
    return %arg0, %c0_i32 : i32, i32
  }
  func.func @transform_1(%arg0: i32) -> (i32, i32) {
    %c0_i32 = arith.constant 0 : i32
    %c0_i32_0 = arith.constant 0 : i32
    %c0_i32_1 = arith.constant 0 : i32
    return %c0_i32, %c0_i32_0 : i32, i32
  }
  func.func @transform_2(%arg0: i32) -> (i32, i32) {
    %c0_i32 = arith.constant 0 : i32
    %c0_i32_0 = arith.constant 0 : i32
    %c0_i32_1 = arith.constant 0 : i32
    return %c0_i32, %c0_i32_0 : i32, i32
  }
  func.func @transform_3(%arg0: i32) -> (i32, i32) {
    %c0_i32 = arith.constant 0 : i32
    %c0_i32_0 = arith.constant 0 : i32
    %c0_i32_1 = arith.constant 0 : i32
    return %c0_i32, %c0_i32_0 : i32, i32
  }
  func.func @transform_4(%arg0: i32) -> (i32, i32) {
    %c0_i32 = arith.constant 0 : i32
    %c0_i32_0 = arith.constant 0 : i32
    %c0_i32_1 = arith.constant 0 : i32
    return %c0_i32, %c0_i32_0 : i32, i32
  }
  func.func @transform_5(%arg0: i32) -> (i32, i32) {
    %c0_i32 = arith.constant 0 : i32
    %c0_i32_0 = arith.constant 0 : i32
    %c0_i32_1 = arith.constant 0 : i32
    return %c0_i32, %c0_i32_0 : i32, i32
  }
  func.func @transform_6(%arg0: i32) -> (i32, i32) {
    %c0_i32 = arith.constant 0 : i32
    %c0_i32_0 = arith.constant 0 : i32
    %c0_i32_1 = arith.constant 0 : i32
    return %c0_i32, %c0_i32_0 : i32, i32
  }
  func.func @transform_7(%arg0: i32) -> (i32, i32) {
    %c0_i32 = arith.constant 0 : i32
    %c0_i32_0 = arith.constant 0 : i32
    %c0_i32_1 = arith.constant 0 : i32
    return %c0_i32, %c0_i32_0 : i32, i32
  }
  func.func @transform_8(%arg0: i32) -> (i32, i32) {
    %c0_i32 = arith.constant 0 : i32
    %c0_i32_0 = arith.constant 0 : i32
    %c0_i32_1 = arith.constant 0 : i32
    return %c0_i32, %c0_i32_0 : i32, i32
  }
  func.func @transform_9(%arg0: i32) -> (i32, i32) {
    %c0_i32 = arith.constant 0 : i32
    %c0_i32_0 = arith.constant 0 : i32
    return %arg0, %c0_i32 : i32, i32
  }
}

</mosaic_0001>

<llo_original>
// kernel: _forward_impl.1
$region0: #{_forward_impl.1}
  #allocation0 [shape = 'u32[]', space=smem, size = 0x4, offset = 0x4, fixed_abs, tag = 'smem constant byte address 0x4 - core index']
  #allocation1 [shape = 'u32[144,128]{1,0:T(1,128)}', space=vmem, size = 0x12000, scoped, tag = 'internal scratch']
  %s0 = inlined_call_operand.hbm [shape: f32[8,48], index: 0, kind: input, shape index: {}]
  %s1 = inlined_call_operand.hbm [shape: bf16[48,256], index: 1, kind: input, shape index: {}]
  %s2 = inlined_call_operand.vmem [shape: f32[1,256], index: 2, kind: input, shape index: {}]
  %s3 = inlined_call_operand.hbm [shape: bf16[256,128], index: 3, kind: input, shape index: {}]
  %s4 = inlined_call_operand.vmem [shape: f32[1,128], index: 4, kind: input, shape index: {}]
  %s5 = inlined_call_operand.hbm [shape: bf16[128,128], index: 5, kind: input, shape index: {}]
  %s6 = inlined_call_operand.vmem [shape: f32[1,128], index: 6, kind: input, shape index: {}]
  %s7 = inlined_call_operand.hbm [shape: bf16[128,128], index: 7, kind: input, shape index: {}]
  %s8 = inlined_call_operand.vmem [shape: f32[1,128], index: 8, kind: input, shape index: {}]
  %s9 = inlined_call_operand.hbm [shape: f32[8,10], index: 9, kind: output, shape index: {}]
  %s10 = sld [smem:[#allocation0]]
  $region66: #{_forward_impl.1} parent=0
    _
  %s12 = ssub.s32 1, %s10
  %s13 = scalar_select 0, %s12, %s10
  $region1: #{_forward_impl.1} parent=0
    #allocation2 [shape = 'u8[4096]{0}', space=vmem, size = 0x1000, scoped, tag = 'input window, operand 0, single buffered']
    #allocation3 [shape = 's32[1]{0}', space=sflag, size = 0x4, scoped, tag = 'scoped memory for _forward_impl.1']
    #allocation4 [shape = 's32[1]{0}', space=sflag, size = 0x4, scoped, tag = 'scoped memory for _forward_impl.1']
    #allocation5 [shape = 'u8[24576]{0}', space=vmem, size = 0x6000, scoped, tag = 'input window, operand 1, single buffered']
    #allocation6 [shape = 's32[1]{0}', space=sflag, size = 0x4, scoped, tag = 'scoped memory for _forward_impl.1']
    #allocation7 [shape = 'u8[65536]{0}', space=vmem, size = 0x10000, scoped, tag = 'input window, operand 3, single buffered']
    #allocation8 [shape = 'u8[32768]{0}', space=vmem, size = 0x8000, scoped, tag = 'input window, operand 5, single buffered']
    #allocation9 [shape = 's32[1]{0}', space=sflag, size = 0x4, scoped, tag = 'scoped memory for _forward_impl.1']
    #allocation10 [shape = 'u8[32768]{0}', space=vmem, size = 0x8000, scoped, tag = 'input window, operand 7, single buffered']
    #allocation11 [shape = 'u8[4096]{0}', space=vmem, size = 0x1000, scoped, tag = 'output window, operand 0, single buffered']
    %14 = vsyncpa [#allocation3], 0
    %15 = vsyncpa [#allocation6], 0
    %16 = vsyncpa [#allocation9], 0
    %17 = vsyncpa [#allocation4], 0
    // Predicated region
    $region2: #{_forward_impl.1} parent=1 // pred_check
      _
    $region3: #{_forward_impl.1} parent=1 // pred_check_branch
      %19 = sbr.rel (0) target = $region5
    $region4: #{_forward_impl.1} parent=1 // pred_region
      %s21 = ssub.s32 128, 128
      %22 = vsyncadd [#allocation3], %s21
      %s24 = sshll.u32 [#allocation2], 4
      %s25 = int_to_ptr.vmem [resolvable:$true] %s24
      %27 = dma.hbm_to_vmem [thread:$0]  %s0, 128, %s25, [#allocation3]
    $region5: #{_forward_impl.1} parent=1 // pred_fallthru
      _
    // Predicated region
    $region6: #{_forward_impl.1} parent=1 // pred_check
      _
    $region7: #{_forward_impl.1} parent=1 // pred_check_branch
      %29 = sbr.rel (0) target = $region9
    $region8: #{_forward_impl.1} parent=1 // pred_region
      %s31 = ssub.s32 768, 768
      %32 = vsyncadd [#allocation6], %s31
      %s33 = sshll.u32 [#allocation5], 4
      %s34 = int_to_ptr.vmem [resolvable:$true] %s33
      %39 = dma.hbm_to_vmem [thread:$0]  %s1, 768, %s34, [#allocation6], 128, 128, 8
    $region9: #{_forward_impl.1} parent=1 // pred_fallthru
      _
    // Predicated region
    $region10: #{_forward_impl.1} parent=1 // pred_check
      _
    $region11: #{_forward_impl.1} parent=1 // pred_check_branch
      %41 = sbr.rel (0) target = $region13
    $region12: #{_forward_impl.1} parent=1 // pred_region
      _
    $region13: #{_forward_impl.1} parent=1 // pred_fallthru
      _
    // Predicated region
    $region14: #{_forward_impl.1} parent=1 // pred_check
      _
    $region15: #{_forward_impl.1} parent=1 // pred_check_branch
      %43 = sbr.rel (0) target = $region17
    $region16: #{_forward_impl.1} parent=1 // pred_region
      %s45 = ssub.s32 2048, 2048
      %46 = vsyncadd [#allocation6], %s45
      %s47 = sshll.u32 [#allocation7], 4
      %s48 = int_to_ptr.vmem [resolvable:$true] %s47
      %53 = dma.hbm_to_vmem [thread:$0]  %s3, 2048, %s48, [#allocation6], 64, 64, 4
    $region17: #{_forward_impl.1} parent=1 // pred_fallthru
      _
    // Predicated region
    $region18: #{_forward_impl.1} parent=1 // pred_check
      _
    $region19: #{_forward_impl.1} parent=1 // pred_check_branch
      %55 = sbr.rel (0) target = $region21
    $region20: #{_forward_impl.1} parent=1 // pred_region
      _
    $region21: #{_forward_impl.1} parent=1 // pred_fallthru
      _
    // Predicated region
    $region22: #{_forward_impl.1} parent=1 // pred_check
      _
    $region23: #{_forward_impl.1} parent=1 // pred_check_branch
      %57 = sbr.rel (0) target = $region25
    $region24: #{_forward_impl.1} parent=1 // pred_region
      %s59 = ssub.s32 1024, 1024
      %60 = vsyncadd [#allocation9], %s59
      %s61 = sshll.u32 [#allocation8], 4
      %s62 = int_to_ptr.vmem [resolvable:$true] %s61
      %67 = dma.hbm_to_vmem [thread:$0]  %s5, 1024, %s62, [#allocation9], 64, 64, 4
    $region25: #{_forward_impl.1} parent=1 // pred_fallthru
      _
    // Predicated region
    $region26: #{_forward_impl.1} parent=1 // pred_check
      _
    $region27: #{_forward_impl.1} parent=1 // pred_check_branch
      %69 = sbr.rel (0) target = $region29
    $region28: #{_forward_impl.1} parent=1 // pred_region
      _
    $region29: #{_forward_impl.1} parent=1 // pred_fallthru
      _
    // Predicated region
    $region30: #{_forward_impl.1} parent=1 // pred_check
      _
    $region31: #{_forward_impl.1} parent=1 // pred_check_branch
      %71 = sbr.rel (0) target = $region33
    $region32: #{_forward_impl.1} parent=1 // pred_region
      %s73 = ssub.s32 1024, 1024
      %74 = vsyncadd [#allocation9], %s73
      %s75 = sshll.u32 [#allocation10], 4
      %s76 = int_to_ptr.vmem [resolvable:$true] %s75
      %81 = dma.hbm_to_vmem [thread:$0]  %s7, 1024, %s76, [#allocation9], 64, 64, 4
    $region33: #{_forward_impl.1} parent=1 // pred_fallthru
      _
    // Predicated region
    $region34: #{_forward_impl.1} parent=1 // pred_check
      _
    $region35: #{_forward_impl.1} parent=1 // pred_check_branch
      %83 = sbr.rel (0) target = $region37
    $region36: #{_forward_impl.1} parent=1 // pred_region
      _
    $region37: #{_forward_impl.1} parent=1 // pred_fallthru
      _
    // Predicated region
    $region38: #{_forward_impl.1} parent=1 // pred_check
      _
    $region39: #{_forward_impl.1} parent=1 // pred_check_branch
      %85 = sbr.rel (0) target = $region41
    $region40: #{_forward_impl.1} parent=1 // pred_region
      %86 = dma.done [#allocation3], 128
    $region41: #{_forward_impl.1} parent=1 // pred_fallthru
      _
    // Predicated region
    $region42: #{_forward_impl.1} parent=1 // pred_check
      _
    $region43: #{_forward_impl.1} parent=1 // pred_check_branch
      %88 = sbr.rel (0) target = $region45
    $region44: #{_forward_impl.1} parent=1 // pred_region
      %89 = dma.done [#allocation6], 768
    $region45: #{_forward_impl.1} parent=1 // pred_fallthru
      _
    // Predicated region
    $region46: #{_forward_impl.1} parent=1 // pred_check
      _
    $region47: #{_forward_impl.1} parent=1 // pred_check_branch
      %91 = sbr.rel (0) target = $region49
    $region48: #{_forward_impl.1} parent=1 // pred_region
      %92 = dma.done [#allocation6], 2048
    $region49: #{_forward_impl.1} parent=1 // pred_fallthru
      _
    // Predicated region
    $region50: #{_forward_impl.1} parent=1 // pred_check
      _
    $region51: #{_forward_impl.1} parent=1 // pred_check_branch
      %94 = sbr.rel (0) target = $region53
    $region52: #{_forward_impl.1} parent=1 // pred_region
      %95 = dma.done [#allocation9], 1024
    $region53: #{_forward_impl.1} parent=1 // pred_fallthru
      _
    // Predicated region
    $region54: #{_forward_impl.1} parent=1 // pred_check
      _
    $region55: #{_forward_impl.1} parent=1 // pred_check_branch
      %97 = sbr.rel (0) target = $region57
    $region56: #{_forward_impl.1} parent=1 // pred_region
      %98 = dma.done [#allocation9], 1024
    $region57: #{_forward_impl.1} parent=1 // pred_fallthru
      _
    %v100 = vld [vmem:[#allocation2] sm:$0xff]
    %v101 = vpack.c.bf16 %v100, %v100
    %v102 = vld [vmem:[#allocation5] sm:$0xff]
    %v103 = vld [vmem:[#allocation5 + $0x8] sm:$0xff]
    %v104 = vld [vmem:[#allocation5 + $0x10] sm:$0xff]
    %v105 = vld [vmem:[#allocation5 + $0x18] sm:$0xff]
    %v106 = vld [vmem:[#allocation5 + $0x20] sm:$0xff]
    %v107 = vld [vmem:[#allocation5 + $0x28] sm:$0xff]
    %v108 = vld [vmem:[%s2] sm:$0x3]
    %v110 = vlaneseq
    %v111 = vshrl.u32 %v110, 7
    %v112 = vsub.s32 0, %v111
    %v113 = vrot.slane %v108, %v112
    %v114 = vlaneseq
    %v115 = vshrl.u32 %v114, 7
    %v116 = vsub.s32 1, %v115
    %v117 = vrot.slane %v108, %v116
    %v126 = vunpack.c.l.b16 %v102
    %v127 = vunpack.c.h.b16 %v102
    %v128 = vunpack.c.l.b16 %v103
    %v129 = vunpack.c.h.b16 %v103
    %v130 = vunpack.c.l.b16 %v104
    %v131 = vunpack.c.h.b16 %v104
    %v132 = vunpack.c.l.b16 %v105
    %v133 = vunpack.c.h.b16 %v105
    %v134 = vunpack.c.l.b16 %v106
    %v135 = vunpack.c.h.b16 %v106
    %v136 = vunpack.c.l.b16 %v107
    %v137 = vunpack.c.h.b16 %v107
    %v138 = vpack.c.b16 %v128, %v126
    %v139 = vpack.c.b16 %v129, %v127
    %v140 = vpack.c.b16 %v132, %v130
    %v141 = vpack.c.b16 %v133, %v131
    %v142 = vpack.c.b16 %v136, %v134
    %v143 = vpack.c.b16 %v137, %v135
    %vm150 = vcmask 392192
    %v152 = vsel %vm150, %v101, 0
    %154 = vmatprep.subr.bf16.mxu0 0
    %155 = vmatpush1.bf16.msra.mxu0 0
    %156 = vmatprep.subr.bf16.mxu0 0
    %157 = vmatpush1.bf16.msra.mxu0 0
    %158 = vmatprep.subr.bf16.mxu0 0
    %159 = vmatpush1.bf16.msra.mxu0 0
    %160 = vmatprep.subr.bf16.mxu0 0
    %161 = vmatpush1.bf16.msra.mxu0 0
    %162 = vmatprep.subr.bf16.mxu0 0
    %163 = vmatpush1.bf16.msra.mxu0 0
    %164 = vmatprep.subr.bf16.mxu0 %v143
    %165 = vmatpush1.bf16.msra.mxu0 %v142
    %166 = vmatprep.subr.bf16.mxu0 %v141
    %167 = vmatpush1.bf16.msra.mxu0 %v140
    %168 = vmatprep.subr.bf16.mxu0 %v139
    %169 = vmatpush1.bf16.msra.mxu0 %v138
    %170 = vmatprep.subr.bf16.mxu0 0
    %171 = vmatpush2.bf16.msra.mxu0 0
    %172 = vmatprep.subr.bf16.mxu0 0
    %173 = vmatpush2.bf16.msra.mxu0 0
    %174 = vmatprep.subr.bf16.mxu0 0
    %175 = vmatpush2.bf16.msra.mxu0 0
    %176 = vmatprep.subr.bf16.mxu0 0
    %177 = vmatpush2.bf16.msra.mxu0 0
    %178 = vmatprep.subr.bf16.mxu0 0
    %179 = vmatpush2.bf16.msra.mxu0 0
    %180 = vmatprep.subr.bf16.mxu0 0
    %181 = vmatpush2.bf16.msra.mxu0 0
    %182 = vmatprep.subr.bf16.mxu0 0
    %183 = vmatpush2.bf16.msra.mxu0 0
    %184 = vmatprep.subr.bf16.mxu0 0
    %185 = vmatpush2.bf16.msra.mxu0 0
    %186 = vmatprep.mubr.bf16.mxu0 0
    %187 = vmatmul.mubr.bf16.gmra.mxu0 %v152
    %v188 = vpop.f32.mrf.mxu0
    %v189 = vadd.f32 %v113, %v188
    %v190 = vpop.f32.mrf.mxu0
    %v191 = vadd.f32 %v117, %v190
    %v192 = vpop.f32.mrf.mxu0
    %v193 = vpop.f32.mrf.mxu0
    %194 = vdwg.mxu0
    %v195 = vmax.f32 %v189, 0.0
    %v196 = vmax.f32 %v191, 0.0
    %v197 = vpack.c.bf16 %v195, %v195
    %v198 = vpack.c.bf16 %v196, %v196
    %v199 = vld [vmem:[#allocation7] sm:$0xf]
    %v200 = vld [vmem:[#allocation7 + $0x4] sm:$0xf]
    %v201 = vld [vmem:[#allocation7 + $0x8] sm:$0xf]
    %v202 = vld [vmem:[#allocation7 + $0xc] sm:$0xf]
    %v203 = vld [vmem:[#allocation7 + $0x10] sm:$0xf]
    %v204 = vld [vmem:[#allocation7 + $0x14] sm:$0xf]
    %v205 = vld [vmem:[#allocation7 + $0x18] sm:$0xf]
    %v206 = vld [vmem:[#allocation7 + $0x1c] sm:$0xf]
    %v207 = vld [vmem:[#allocation7 + $0x20] sm:$0xf]
    %v208 = vld [vmem:[#allocation7 + $0x24] sm:$0xf]
    %v209 = vld [vmem:[#allocation7 + $0x28] sm:$0xf]
    %v210 = vld [vmem:[#allocation7 + $0x2c] sm:$0xf]
    %v211 = vld [vmem:[#allocation7 + $0x30] sm:$0xf]
    %v212 = vld [vmem:[#allocation7 + $0x34] sm:$0xf]
    %v213 = vld [vmem:[#allocation7 + $0x38] sm:$0xf]
    %v214 = vld [vmem:[#allocation7 + $0x3c] sm:$0xf]
    %v215 = vld [vmem:[#allocation7 + $0x40] sm:$0xf]
    %v216 = vld [vmem:[#allocation7 + $0x44] sm:$0xf]
    %v217 = vld [vmem:[#allocation7 + $0x48] sm:$0xf]
    %v218 = vld [vmem:[#allocation7 + $0x4c] sm:$0xf]
    %v219 = vld [vmem:[#allocation7 + $0x50] sm:$0xf]
    %v220 = vld [vmem:[#allocation7 + $0x54] sm:$0xf]
    %v221 = vld [vmem:[#allocation7 + $0x58] sm:$0xf]
    %v222 = vld [vmem:[#allocation7 + $0x5c] sm:$0xf]
    %v223 = vld [vmem:[#allocation7 + $0x60] sm:$0xf]
    %v224 = vld [vmem:[#allocation7 + $0x64] sm:$0xf]
    %v225 = vld [vmem:[#allocation7 + $0x68] sm:$0xf]
    %v226 = vld [vmem:[#allocation7 + $0x6c] sm:$0xf]
    %v227 = vld [vmem:[#allocation7 + $0x70] sm:$0xf]
    %v228 = vld [vmem:[#allocation7 + $0x74] sm:$0xf]
    %v229 = vld [vmem:[#allocation7 + $0x78] sm:$0xf]
    %v230 = vld [vmem:[#allocation7 + $0x7c] sm:$0xf]
    %v231 = vld [vmem:[%s4] sm:$0x1]
    %v233 = vlaneseq
    %v234 = vshrl.u32 %v233, 7
    %v235 = vsub.s32 0, %v234
    %v236 = vrot.slane %v231, %v235
    %v270 = vunpack.c.l.b16 %v199
    %v271 = vunpack.c.l.b16 %v200
    %v272 = vunpack.c.l.b16 %v201
    %v273 = vunpack.c.l.b16 %v202
    %v274 = vunpack.c.l.b16 %v203
    %v275 = vunpack.c.l.b16 %v204
    %v276 = vunpack.c.l.b16 %v205
    %v277 = vunpack.c.l.b16 %v206
    %v278 = vunpack.c.l.b16 %v207
    %v279 = vunpack.c.l.b16 %v208
    %v280 = vunpack.c.l.b16 %v209
    %v281 = vunpack.c.l.b16 %v210
    %v282 = vunpack.c.l.b16 %v211
    %v283 = vunpack.c.l.b16 %v212
    %v284 = vunpack.c.l.b16 %v213
    %v285 = vunpack.c.l.b16 %v214
    %v286 = vunpack.c.l.b16 %v215
    %v287 = vunpack.c.l.b16 %v216
    %v288 = vunpack.c.l.b16 %v217
    %v289 = vunpack.c.l.b16 %v218
    %v290 = vunpack.c.l.b16 %v219
    %v291 = vunpack.c.l.b16 %v220
    %v292 = vunpack.c.l.b16 %v221
    %v293 = vunpack.c.l.b16 %v222
    %v294 = vunpack.c.l.b16 %v223
    %v295 = vunpack.c.l.b16 %v224
    %v296 = vunpack.c.l.b16 %v225
    %v297 = vunpack.c.l.b16 %v226
    %v298 = vunpack.c.l.b16 %v227
    %v299 = vunpack.c.l.b16 %v228
    %v300 = vunpack.c.l.b16 %v229
    %v301 = vunpack.c.l.b16 %v230
    %v302 = vpack.c.b16 %v271, %v270
    %v303 = vpack.c.b16 %v273, %v272
    %v304 = vpack.c.b16 %v275, %v274
    %v305 = vpack.c.b16 %v277, %v276
    %v306 = vpack.c.b16 %v279, %v278
    %v307 = vpack.c.b16 %v281, %v280
    %v308 = vpack.c.b16 %v283, %v282
    %v309 = vpack.c.b16 %v285, %v284
    %v310 = vpack.c.b16 %v287, %v286
    %v311 = vpack.c.b16 %v289, %v288
    %v312 = vpack.c.b16 %v291, %v290
    %v313 = vpack.c.b16 %v293, %v292
    %v314 = vpack.c.b16 %v295, %v294
    %v315 = vpack.c.b16 %v297, %v296
    %v316 = vpack.c.b16 %v299, %v298
    %v317 = vpack.c.b16 %v301, %v300
    %334 = vmatprep.subr.bf16.mxu0 0
    %335 = vmatpush1.bf16.msra.mxu0 %v309
    %336 = vmatprep.subr.bf16.mxu0 0
    %337 = vmatpush1.bf16.msra.mxu0 %v308
    %338 = vmatprep.subr.bf16.mxu0 0
    %339 = vmatpush1.bf16.msra.mxu0 %v307
    %340 = vmatprep.subr.bf16.mxu0 0
    %341 = vmatpush1.bf16.msra.mxu0 %v306
    %342 = vmatprep.subr.bf16.mxu0 0
    %343 = vmatpush1.bf16.msra.mxu0 %v305
    %344 = vmatprep.subr.bf16.mxu0 0
    %345 = vmatpush1.bf16.msra.mxu0 %v304
    %346 = vmatprep.subr.bf16.mxu0 0
    %347 = vmatpush1.bf16.msra.mxu0 %v303
    %348 = vmatprep.subr.bf16.mxu0 0
    %349 = vmatpush1.bf16.msra.mxu0 %v302
    %350 = vmatprep.subr.bf16.mxu0 0
    %351 = vmatpush2.bf16.msra.mxu0 %v317
    %352 = vmatprep.subr.bf16.mxu0 0
    %353 = vmatpush2.bf16.msra.mxu0 %v316
    %354 = vmatprep.subr.bf16.mxu0 0
    %355 = vmatpush2.bf16.msra.mxu0 %v315
    %356 = vmatprep.subr.bf16.mxu0 0
    %357 = vmatpush2.bf16.msra.mxu0 %v314
    %358 = vmatprep.subr.bf16.mxu0 0
    %359 = vmatpush2.bf16.msra.mxu0 %v313
    %360 = vmatprep.subr.bf16.mxu0 0
    %361 = vmatpush2.bf16.msra.mxu0 %v312
    %362 = vmatprep.subr.bf16.mxu0 0
    %363 = vmatpush2.bf16.msra.mxu0 %v311
    %364 = vmatprep.subr.bf16.mxu0 0
    %365 = vmatpush2.bf16.msra.mxu0 %v310
    %366 = vmatprep.mubr.bf16.mxu0 %v198
    %367 = vmatmul.mubr.bf16.gmra.mxu0 %v197
    %v368 = vpop.f32.mrf.mxu0
    %v369 = vadd.f32 %v236, %v368
    %v370 = vpop.f32.mrf.mxu0
    %v371 = vpop.f32.mrf.mxu0
    %v372 = vpop.f32.mrf.mxu0
    %373 = vdwg.mxu0
    %v374 = vmax.f32 %v369, 0.0
    %v375 = vpack.c.bf16 %v374, %v374
    %v376 = vld [vmem:[#allocation8] sm:$0xf]
    %v377 = vld [vmem:[#allocation8 + $0x4] sm:$0xf]
    %v378 = vld [vmem:[#allocation8 + $0x8] sm:$0xf]
    %v379 = vld [vmem:[#allocation8 + $0xc] sm:$0xf]
    %v380 = vld [vmem:[#allocation8 + $0x10] sm:$0xf]
    %v381 = vld [vmem:[#allocation8 + $0x14] sm:$0xf]
    %v382 = vld [vmem:[#allocation8 + $0x18] sm:$0xf]
    %v383 = vld [vmem:[#allocation8 + $0x1c] sm:$0xf]
    %v384 = vld [vmem:[#allocation8 + $0x20] sm:$0xf]
    %v385 = vld [vmem:[#allocation8 + $0x24] sm:$0xf]
    %v386 = vld [vmem:[#allocation8 + $0x28] sm:$0xf]
    %v387 = vld [vmem:[#allocation8 + $0x2c] sm:$0xf]
    %v388 = vld [vmem:[#allocation8 + $0x30] sm:$0xf]
    %v389 = vld [vmem:[#allocation8 + $0x34] sm:$0xf]
    %v390 = vld [vmem:[#allocation8 + $0x38] sm:$0xf]
    %v391 = vld [vmem:[#allocation8 + $0x3c] sm:$0xf]
    %v392 = vld [vmem:[%s6] sm:$0x1]
    %v394 = vlaneseq
    %v395 = vshrl.u32 %v394, 7
    %v396 = vsub.s32 0, %v395
    %v397 = vrot.slane %v392, %v396
    %v415 = vunpack.c.l.b16 %v376
    %v416 = vunpack.c.l.b16 %v377
    %v417 = vunpack.c.l.b16 %v378
    %v418 = vunpack.c.l.b16 %v379
    %v419 = vunpack.c.l.b16 %v380
    %v420 = vunpack.c.l.b16 %v381
    %v421 = vunpack.c.l.b16 %v382
    %v422 = vunpack.c.l.b16 %v383
    %v423 = vunpack.c.l.b16 %v384
    %v424 = vunpack.c.l.b16 %v385
    %v425 = vunpack.c.l.b16 %v386
    %v426 = vunpack.c.l.b16 %v387
    %v427 = vunpack.c.l.b16 %v388
    %v428 = vunpack.c.l.b16 %v389
    %v429 = vunpack.c.l.b16 %v390
    %v430 = vunpack.c.l.b16 %v391
    %v431 = vpack.c.b16 %v416, %v415
    %v432 = vpack.c.b16 %v418, %v417
    %v433 = vpack.c.b16 %v420, %v419
    %v434 = vpack.c.b16 %v422, %v421
    %v435 = vpack.c.b16 %v424, %v423
    %v436 = vpack.c.b16 %v426, %v425
    %v437 = vpack.c.b16 %v428, %v427
    %v438 = vpack.c.b16 %v430, %v429
    %447 = vmatprep.subr.bf16.mxu0 0
    %448 = vmatpush1.bf16.msra.mxu0 %v438
    %449 = vmatprep.subr.bf16.mxu0 0
    %450 = vmatpush1.bf16.msra.mxu0 %v437
    %451 = vmatprep.subr.bf16.mxu0 0
    %452 = vmatpush1.bf16.msra.mxu0 %v436
    %453 = vmatprep.subr.bf16.mxu0 0
    %454 = vmatpush1.bf16.msra.mxu0 %v435
    %455 = vmatprep.subr.bf16.mxu0 0
    %456 = vmatpush1.bf16.msra.mxu0 %v434
    %457 = vmatprep.subr.bf16.mxu0 0
    %458 = vmatpush1.bf16.msra.mxu0 %v433
    %459 = vmatprep.subr.bf16.mxu0 0
    %460 = vmatpush1.bf16.msra.mxu0 %v432
    %461 = vmatprep.subr.bf16.mxu0 0
    %462 = vmatpush1.bf16.msra.mxu0 %v431
    %463 = vmatprep.subr.bf16.mxu0 0
    %464 = vmatpush2.bf16.msra.mxu0 0
    %465 = vmatprep.subr.bf16.mxu0 0
    %466 = vmatpush2.bf16.msra.mxu0 0
    %467 = vmatprep.subr.bf16.mxu0 0
    %468 = vmatpush2.bf16.msra.mxu0 0
    %469 = vmatprep.subr.bf16.mxu0 0
    %470 = vmatpush2.bf16.msra.mxu0 0
    %471 = vmatprep.subr.bf16.mxu0 0
    %472 = vmatpush2.bf16.msra.mxu0 0
    %473 = vmatprep.subr.bf16.mxu0 0
    %474 = vmatpush2.bf16.msra.mxu0 0
    %475 = vmatprep.subr.bf16.mxu0 0
    %476 = vmatpush2.bf16.msra.mxu0 0
    %477 = vmatprep.subr.bf16.mxu0 0
    %478 = vmatpush2.bf16.msra.mxu0 0
    %479 = vmatprep.mubr.bf16.mxu0 0
    %480 = vmatmul.mubr.bf16.gmra.mxu0 %v375
    %v481 = vpop.f32.mrf.mxu0
    %v482 = vadd.f32 %v397, %v481
    %v483 = vpop.f32.mrf.mxu0
    %v484 = vpop.f32.mrf.mxu0
    %v485 = vpop.f32.mrf.mxu0
    %486 = vdwg.mxu0
    %v487 = vmax.f32 %v482, 0.0
    %v488 = vpack.c.bf16 %v487, %v487
    %v489 = vld [vmem:[#allocation10] sm:$0xf]
    %v490 = vld [vmem:[#allocation10 + $0x4] sm:$0xf]
    %v491 = vld [vmem:[#allocation10 + $0x8] sm:$0xf]
    %v492 = vld [vmem:[#allocation10 + $0xc] sm:$0xf]
    %v493 = vld [vmem:[#allocation10 + $0x10] sm:$0xf]
    %v494 = vld [vmem:[#allocation10 + $0x14] sm:$0xf]
    %v495 = vld [vmem:[#allocation10 + $0x18] sm:$0xf]
    %v496 = vld [vmem:[#allocation10 + $0x1c] sm:$0xf]
    %v497 = vld [vmem:[#allocation10 + $0x20] sm:$0xf]
    %v498 = vld [vmem:[#allocation10 + $0x24] sm:$0xf]
    %v499 = vld [vmem:[#allocation10 + $0x28] sm:$0xf]
    %v500 = vld [vmem:[#allocation10 + $0x2c] sm:$0xf]
    %v501 = vld [vmem:[#allocation10 + $0x30] sm:$0xf]
    %v502 = vld [vmem:[#allocation10 + $0x34] sm:$0xf]
    %v503 = vld [vmem:[#allocation10 + $0x38] sm:$0xf]
    %v504 = vld [vmem:[#allocation10 + $0x3c] sm:$0xf]
    %v505 = vld [vmem:[%s8] sm:$0x1]
    %v507 = vlaneseq
    %v508 = vshrl.u32 %v507, 7
    %v509 = vsub.s32 0, %v508
    %v510 = vrot.slane %v505, %v509
    %v528 = vunpack.c.l.b16 %v489
    %v529 = vunpack.c.l.b16 %v490
    %v530 = vunpack.c.l.b16 %v491
    %v531 = vunpack.c.l.b16 %v492
    %v532 = vunpack.c.l.b16 %v493
    %v533 = vunpack.c.l.b16 %v494
    %v534 = vunpack.c.l.b16 %v495
    %v535 = vunpack.c.l.b16 %v496
    %v536 = vunpack.c.l.b16 %v497
    %v537 = vunpack.c.l.b16 %v498
    %v538 = vunpack.c.l.b16 %v499
    %v539 = vunpack.c.l.b16 %v500
    %v540 = vunpack.c.l.b16 %v501
    %v541 = vunpack.c.l.b16 %v502
    %v542 = vunpack.c.l.b16 %v503
    %v543 = vunpack.c.l.b16 %v504
    %v544 = vpack.c.b16 %v529, %v528
    %v545 = vpack.c.b16 %v531, %v530
    %v546 = vpack.c.b16 %v533, %v532
    %v547 = vpack.c.b16 %v535, %v534
    %v548 = vpack.c.b16 %v537, %v536
    %v549 = vpack.c.b16 %v539, %v538
    %v550 = vpack.c.b16 %v541, %v540
    %v551 = vpack.c.b16 %v543, %v542
    %560 = vmatprep.subr.bf16.mxu0 0
    %561 = vmatpush1.bf16.msra.mxu0 %v551
    %562 = vmatprep.subr.bf16.mxu0 0
    %563 = vmatpush1.bf16.msra.mxu0 %v550
    %564 = vmatprep.subr.bf16.mxu0 0
    %565 = vmatpush1.bf16.msra.mxu0 %v549
    %566 = vmatprep.subr.bf16.mxu0 0
    %567 = vmatpush1.bf16.msra.mxu0 %v548
    %568 = vmatprep.subr.bf16.mxu0 0
    %569 = vmatpush1.bf16.msra.mxu0 %v547
    %570 = vmatprep.subr.bf16.mxu0 0
    %571 = vmatpush1.bf16.msra.mxu0 %v546
    %572 = vmatprep.subr.bf16.mxu0 0
    %573 = vmatpush1.bf16.msra.mxu0 %v545
    %574 = vmatprep.subr.bf16.mxu0 0
    %575 = vmatpush1.bf16.msra.mxu0 %v544
    %576 = vmatprep.subr.bf16.mxu0 0
    %577 = vmatpush2.bf16.msra.mxu0 0
    %578 = vmatprep.subr.bf16.mxu0 0
    %579 = vmatpush2.bf16.msra.mxu0 0
    %580 = vmatprep.subr.bf16.mxu0 0
    %581 = vmatpush2.bf16.msra.mxu0 0
    %582 = vmatprep.subr.bf16.mxu0 0
    %583 = vmatpush2.bf16.msra.mxu0 0
    %584 = vmatprep.subr.bf16.mxu0 0
    %585 = vmatpush2.bf16.msra.mxu0 0
    %586 = vmatprep.subr.bf16.mxu0 0
    %587 = vmatpush2.bf16.msra.mxu0 0
    %588 = vmatprep.subr.bf16.mxu0 0
    %589 = vmatpush2.bf16.msra.mxu0 0
    %590 = vmatprep.subr.bf16.mxu0 0
    %591 = vmatpush2.bf16.msra.mxu0 0
    %592 = vmatprep.mubr.bf16.mxu0 0
    %593 = vmatmul.mubr.bf16.gmra.mxu0 %v488
    %v594 = vpop.f32.mrf.mxu0
    %v595 = vadd.f32 %v510, %v594
    %v596 = vpop.f32.mrf.mxu0
    %v597 = vpop.f32.mrf.mxu0
    %v598 = vpop.f32.mrf.mxu0
    %599 = vdwg.mxu0
    %v600 = vmax.f32 %v595, 0.0
    %vm601 = vcmask 80896
    %602 = vst.msk [vmem:[#allocation11] sm:$0xff] %vm601, %v600
    // Predicated region
    $region58: #{_forward_impl.1} parent=1 // pred_check
      _
    $region59: #{_forward_impl.1} parent=1 // pred_check_branch
      %604 = sbr.rel (0) target = $region61
    $region60: #{_forward_impl.1} parent=1 // pred_region
      %s606 = ssub.s32 128, 128
      %607 = vsyncadd [#allocation4], %s606
      %s609 = sshll.u32 [#allocation11], 4
      %s610 = int_to_ptr.vmem [resolvable:$true] %s609
      %612 = dma.vmem_to_hbm [thread:$0]  %s610, 128, %s9, [#allocation4]
    $region61: #{_forward_impl.1} parent=1 // pred_fallthru
      _
    // Predicated region
    $region62: #{_forward_impl.1} parent=1 // pred_check
      _
    $region63: #{_forward_impl.1} parent=1 // pred_check_branch
      %614 = sbr.rel (0) target = $region65
    $region64: #{_forward_impl.1} parent=1 // pred_region
      %615 = dma.done [#allocation4], 128
    $region65: #{_forward_impl.1} parent=1 // pred_fallthru
      _
    %616 = vsyncpa [#allocation3], 1
    %617 = vsyncpa [#allocation6], 1
    %618 = vsyncpa [#allocation9], 1
    %619 = vsyncpa [#allocation4], 1

</llo_original>
